<compile_context>
chip_gen: v7x
topology: tpu7x:2x2x1
jax: 0.10.0
libtpu: 0.0.40
codegen_flags: <defaults>
</compile_context>

<pallas_src>
import functools

import jax
import jax.numpy as jnp
from jax.experimental import pallas as pl
from jax.experimental.pallas import tpu as pltpu

SCALE = 30.0
MARGIN = 0.35

_NEG_BIG = -1e30          # "minus infinity" that never produces inf-inf NaNs
_MAX_BLOCK_N = 512        # rows per batch tile    (multiple of 8)
_MAX_BLOCK_C = 2048       # classes per class tile (multiple of 128)


def _round_up(x, m):
    return ((x + m - 1) // m) * m


def _am_softmax_loss_kernel(logits_ref, tgt_ref, out_ref,
                            m_ref, l_ref, t_ref,
                            *, scale, scale_margin, c_true, block_c):
    j = pl.program_id(1)                      # class-tile index ("arbitrary")
    n_j = pl.num_programs(1)

    # ---- init running statistics at the first class tile of each batch tile
    @pl.when(j == 0)
    def _init():
        m_ref[...] = jnp.full(m_ref.shape, _NEG_BIG, jnp.float32)   # running max
        l_ref[...] = jnp.zeros(l_ref.shape, jnp.float32)            # running sum(exp)
        t_ref[...] = jnp.zeros(t_ref.shape, jnp.float32)            # target logit

    # Scale once; fold the margin with a single select against the rebuilt
    # one-hot mask (tile-local iota vs shifted target -> iota stays invariant).
    s_logits = logits_ref[...].astype(jnp.float32) * scale          # [bn, bc]
    tgt_local = tgt_ref[...] - j * block_c                          # [bn, 1] int32
    iota = jax.lax.broadcasted_iota(jnp.int32, s_logits.shape, 1)   # grid-invariant
    onehot = iota == tgt_local                                      # [bn, bc] bool

    # AM-softmax adjusted logits: scale * (logits - margin * one_hot)
    adj = jnp.where(onehot, s_logits - scale_margin, s_logits)

    def _accumulate(adj_tile):
        # Online (flash-style) logsumexp update + target-logit accumulation.
        m_prev = m_ref[...]
        m_new = jnp.maximum(m_prev, jnp.max(adj_tile, axis=-1, keepdims=True))
        alpha = jnp.exp(m_prev - m_new)
        l_ref[...] = l_ref[...] * alpha + jnp.sum(
            jnp.exp(adj_tile - m_new), axis=-1, keepdims=True)
        t_ref[...] = t_ref[...] + jnp.sum(
            jnp.where(onehot, adj_tile, 0.0), axis=-1, keepdims=True)
        m_ref[...] = m_new

    if c_true % block_c == 0:
        # No padded class lanes anywhere -> no masking on the hot path.
        _accumulate(adj)
    else:
        # Padded class lanes only exist in the last class tile; mask only there.
        is_last = j == n_j - 1

        @pl.when(jnp.logical_not(is_last))
        def _hot():
            _accumulate(adj)

        @pl.when(is_last)
        def _edge():
            lane_ok = iota < (c_true - j * block_c)
            _accumulate(jnp.where(lane_ok, adj, _NEG_BIG))

    # ---- finalize: per-row negative log-likelihood.  Padded batch rows of an
    # edge batch tile lie outside the [N, 1] output array and are never
    # written back by Pallas, so no explicit row mask is required.
    @pl.when(j == n_j - 1)
    def _finalize():
        out_ref[...] = m_ref[...] + jnp.log(l_ref[...]) - t_ref[...]


def am_softmax_loss(logits, one_hot_targets, targets, *,
                    scale=SCALE, margin=MARGIN, block_n=None, block_c=None):
    """Pallas AM-softmax cross-entropy loss (mean over batch). Returns f32 scalar.

    `one_hot_targets` is accepted for signature parity with the PyTorch module
    but never read: the kernel rebuilds the mask from integer `targets`,
    roughly halving HBM traffic for this memory-bound op.  bf16 `logits` are
    accepted; compute is upcast to f32 in-kernel.
    """
    del one_hot_targets  # not read from HBM
    n, c = logits.shape
    targets = targets.astype(jnp.int32).reshape(n, 1)

    # Batch tile: multiples of 8 (or the full dim for tiny N), sized so the
    # "parallel" axis has >= 2 tiles whenever possible (v7x has 2 TensorCores).
    if block_n is not None:
        bn = block_n
    elif n <= 8:
        bn = n
    else:
        bn = min(_MAX_BLOCK_N, _round_up(pl.cdiv(n, 2), 8))
    # Class tile: full dim for small C, otherwise a 2048-wide aligned tile
    # (8 MiB double-buffered f32 input -> safe on v5e/v6e/v7x scoped VMEM).
    bc = block_c if block_c is not None else min(c, _MAX_BLOCK_C)

    grid = (pl.cdiv(n, bn), pl.cdiv(c, bc))

    kernel = functools.partial(
        _am_softmax_loss_kernel,
        scale=float(scale),
        scale_margin=float(scale) * float(margin),
        c_true=c, block_c=bc)

    per_row_nll = pl.pallas_call(
        kernel,
        out_shape=jax.ShapeDtypeStruct((n, 1), jnp.float32),
        grid_spec=pltpu.PrefetchScalarGridSpec(
            num_scalar_prefetch=0,
            grid=grid,
            in_specs=[
                pl.BlockSpec((bn, bc), lambda i, j: (i, j)),   # logits tile
                pl.BlockSpec((bn, 1), lambda i, j: (i, 0)),    # int32 targets
            ],
            out_specs=pl.BlockSpec((bn, 1), lambda i, j: (i, 0)),
            scratch_shapes=[
                pltpu.VMEM((bn, 1), jnp.float32),   # running max
                pltpu.VMEM((bn, 1), jnp.float32),   # running sum(exp)
                pltpu.VMEM((bn, 1), jnp.float32),   # target logit
            ],
        ),
        compiler_params=pltpu.CompilerParams(
            dimension_semantics=("parallel", "arbitrary")),
    )(logits, targets)

    # Tiny [N]-length reduce in XLA; mean over the *true* batch size.
    return jnp.sum(per_row_nll) / jnp.float32(n)


def _reference(logits, one_hot, scale=SCALE, margin=MARGIN):
    adj = scale * (logits.astype(jnp.float32) - margin * one_hot.astype(jnp.float32))
    logz = jax.scipy.special.logsumexp(adj, axis=-1)
    tgt = jnp.sum(adj * one_hot.astype(jnp.float32), axis=-1)
    return jnp.mean(logz - tgt)


if __name__ == "__main__":
    key = jax.random.PRNGKey(0)
    k1, k2, k3, k4 = jax.random.split(key, 4)

    # Small shapes consistent with the module's forward.
    batch, class_num = 8, 32
    logits = jax.random.normal(k1, (batch, class_num), dtype=jnp.float32)
    targets = jax.random.randint(k2, (batch,), 0, class_num)
    one_hot_targets = jax.nn.one_hot(targets, class_num, dtype=jnp.float32)

    loss = jax.block_until_ready(am_softmax_loss(logits, one_hot_targets, targets))
    ref = _reference(logits, one_hot_targets)
    assert jnp.allclose(loss, ref, rtol=2e-5, atol=1e-4), (loss, ref)

    # Ragged shapes with forced small tiles: exercises batch-edge write
    # masking, the gated class-edge mask, the multi-step online logsumexp,
    # and the >=2-batch-tile "parallel" axis.
    n2, c2 = 13, 200
    logits2 = jax.random.normal(k3, (n2, c2), dtype=jnp.float32)
    targets2 = jax.random.randint(k4, (n2,), 0, c2)
    one_hot2 = jax.nn.one_hot(targets2, c2, dtype=jnp.float32)
    loss2 = jax.block_until_ready(
        am_softmax_loss(logits2, one_hot2, targets2, block_n=8, block_c=128))
    ref2 = _reference(logits2, one_hot2)
    assert jnp.allclose(loss2, ref2, rtol=2e-5, atol=1e-4), (loss2, ref2)

    print("KERNEL_OK")
</pallas_src>

<mosaic_0001>
module attributes {stable_mosaic.version = 11 : i64} {
  func.func @_am_softmax_loss_kernel(%arg0: i32, %arg1: i32, %arg2: memref<8x32xf32, #tpu.memory_space<vmem>>, %arg3: memref<8x1xi32, #tpu.memory_space<vmem>>, %arg4: memref<8x1xf32, #tpu.memory_space<vmem>>, %arg5: memref<8x1xf32, #tpu.memory_space<vmem>>, %arg6: memref<8x1xf32, #tpu.memory_space<vmem>>, %arg7: memref<8x1xf32, #tpu.memory_space<vmem>>) attributes {dimension_semantics = [#tpu.dimension_semantics<parallel>, #tpu.dimension_semantics<arbitrary>], iteration_bounds = array<i64: 1, 1>, scalar_prefetch = 0 : i64, scratch_operands = 3 : i64, tpu.core_type = #tpu.core_type<tc>, window_params = [{transform_indices = @transform_0, window_bounds = array<i64: 8, 32>}, {transform_indices = @transform_1, window_bounds = array<i64: 8, 1>}, {transform_indices = @transform_2, window_bounds = array<i64: 8, 1>}]} {
    %c0_i32 = arith.constant 0 : i32
    %0 = arith.cmpi eq, %arg1, %c0_i32 : i32
    %1 = arith.extui %0 : i1 to i32
    %c0_i32_0 = arith.constant 0 : i32
    %2 = arith.cmpi ne, %1, %c0_i32_0 : i32
    scf.if %2 {
      %cst_23 = arith.constant -1.000000e+30 : f32
      %42 = vector.broadcast %cst_23 : f32 to vector<8x1xf32>
      %c0_24 = arith.constant 0 : index
      %c0_25 = arith.constant 0 : index
      %43 = vector.load %arg5[%c0_24, %c0_25] : memref<8x1xf32, #tpu.memory_space<vmem>>, vector<8x1xf32>
      tpu.vector_store %arg5[%c0_24, %c0_25], %42 {strides = array<i32>} : memref<8x1xf32, #tpu.memory_space<vmem>>, vector<8x1xf32>,
      %cst_26 = arith.constant 0.000000e+00 : f32
      %44 = vector.broadcast %cst_26 : f32 to vector<8x1xf32>
      %c0_27 = arith.constant 0 : index
      %c0_28 = arith.constant 0 : index
      %45 = vector.load %arg6[%c0_27, %c0_28] : memref<8x1xf32, #tpu.memory_space<vmem>>, vector<8x1xf32>
      tpu.vector_store %arg6[%c0_27, %c0_28], %44 {strides = array<i32>} : memref<8x1xf32, #tpu.memory_space<vmem>>, vector<8x1xf32>,
      %cst_29 = arith.constant 0.000000e+00 : f32
      %46 = vector.broadcast %cst_29 : f32 to vector<8x1xf32>
      %c0_30 = arith.constant 0 : index
      %c0_31 = arith.constant 0 : index
      %47 = vector.load %arg7[%c0_30, %c0_31] : memref<8x1xf32, #tpu.memory_space<vmem>>, vector<8x1xf32>
      tpu.vector_store %arg7[%c0_30, %c0_31], %46 {strides = array<i32>} : memref<8x1xf32, #tpu.memory_space<vmem>>, vector<8x1xf32>,
    } else {
    }
    %c0 = arith.constant 0 : index
    %c0_1 = arith.constant 0 : index
    %3 = vector.load %arg2[%c0, %c0_1] : memref<8x32xf32, #tpu.memory_space<vmem>>, vector<8x32xf32>
    %cst = arith.constant 3.000000e+01 : f32
    %4 = vector.broadcast %cst : f32 to vector<8x32xf32>
    %5 = arith.mulf %3, %4 : vector<8x32xf32>
    %c0_2 = arith.constant 0 : index
    %c0_3 = arith.constant 0 : index
    %6 = vector.load %arg3[%c0_2, %c0_3] : memref<8x1xi32, #tpu.memory_space<vmem>>, vector<8x1xi32>
    %c32_i32 = arith.constant 32 : i32
    %7 = arith.muli %arg1, %c32_i32 : i32
    %8 = vector.broadcast %7 : i32 to vector<8x1xi32>
    %9 = arith.subi %6, %8 : vector<8x1xi32>
    %10 = tpu.iota {dimensions = array<i32: 1>} : vector<8x32xi32>
    %11 = vector.broadcast %9 : vector<8x1xi32> to vector<8x32xi32>
    %12 = arith.cmpi eq, %10, %11 : vector<8x32xi32>
    %cst_4 = arith.constant 1.050000e+01 : f32
    %13 = vector.broadcast %cst_4 : f32 to vector<8x32xf32>
    %14 = arith.subf %5, %13 : vector<8x32xf32>
    %15 = arith.select %12, %14, %5 : vector<8x32xi1>, vector<8x32xf32>
    %c0_5 = arith.constant 0 : index
    %c0_6 = arith.constant 0 : index
    %16 = vector.load %arg5[%c0_5, %c0_6] : memref<8x1xf32, #tpu.memory_space<vmem>>, vector<8x1xf32>
    %cst_7 = arith.constant dense<0xFF800000> : vector<8xf32>
    %17 = vector.multi_reduction <maximumf>, %15, %cst_7 [1] : vector<8x32xf32> to vector<8xf32>
    %18 = vector.shape_cast %17 : vector<8xf32> to vector<8x1xf32>
    %19 = arith.maximumf %16, %18 : vector<8x1xf32>
    %20 = arith.subf %16, %19 : vector<8x1xf32>
    %21 = math.exp %20 : vector<8x1xf32>
    %c0_8 = arith.constant 0 : index
    %c0_9 = arith.constant 0 : index
    %22 = vector.load %arg6[%c0_8, %c0_9] : memref<8x1xf32, #tpu.memory_space<vmem>>, vector<8x1xf32>
    %23 = arith.mulf %22, %21 : vector<8x1xf32>
    %24 = vector.broadcast %19 : vector<8x1xf32> to vector<8x32xf32>
    %25 = arith.subf %15, %24 : vector<8x32xf32>
    %26 = math.exp %25 : vector<8x32xf32>
    %cst_10 = arith.constant dense<0.000000e+00> : vector<8xf32>
    %27 = vector.multi_reduction <add>, %26, %cst_10 [1] : vector<8x32xf32> to vector<8xf32>
    %28 = vector.shape_cast %27 : vector<8xf32> to vector<8x1xf32>
    %29 = arith.addf %23, %28 : vector<8x1xf32>
    %c0_11 = arith.constant 0 : index
    %c0_12 = arith.constant 0 : index
    %30 = vector.load %arg6[%c0_11, %c0_12] : memref<8x1xf32, #tpu.memory_space<vmem>>, vector<8x1xf32>
    tpu.vector_store %arg6[%c0_11, %c0_12], %29 {strides = array<i32>} : memref<8x1xf32, #tpu.memory_space<vmem>>, vector<8x1xf32>,
    %c0_13 = arith.constant 0 : index
    %c0_14 = arith.constant 0 : index
    %31 = vector.load %arg7[%c0_13, %c0_14] : memref<8x1xf32, #tpu.memory_space<vmem>>, vector<8x1xf32>
    %cst_15 = arith.constant 0.000000e+00 : f32
    %32 = vector.broadcast %cst_15 : f32 to vector<8x32xf32>
    %33 = arith.select %12, %15, %32 : vector<8x32xi1>, vector<8x32xf32>
    %cst_16 = arith.constant dense<0.000000e+00> : vector<8xf32>
    %34 = vector.multi_reduction <add>, %33, %cst_16 [1] : vector<8x32xf32> to vector<8xf32>
    %35 = vector.shape_cast %34 : vector<8xf32> to vector<8x1xf32>
    %36 = arith.addf %31, %35 : vector<8x1xf32>
    %c0_17 = arith.constant 0 : index
    %c0_18 = arith.constant 0 : index
    %37 = vector.load %arg7[%c0_17, %c0_18] : memref<8x1xf32, #tpu.memory_space<vmem>>, vector<8x1xf32>
    tpu.vector_store %arg7[%c0_17, %c0_18], %36 {strides = array<i32>} : memref<8x1xf32, #tpu.memory_space<vmem>>, vector<8x1xf32>,
    %c0_19 = arith.constant 0 : index
    %c0_20 = arith.constant 0 : index
    %38 = vector.load %arg5[%c0_19, %c0_20] : memref<8x1xf32, #tpu.memory_space<vmem>>, vector<8x1xf32>
    tpu.vector_store %arg5[%c0_19, %c0_20], %19 {strides = array<i32>} : memref<8x1xf32, #tpu.memory_space<vmem>>, vector<8x1xf32>,
    %c0_i32_21 = arith.constant 0 : i32
    %39 = arith.cmpi eq, %arg1, %c0_i32_21 : i32
    %40 = arith.extui %39 : i1 to i32
    %c0_i32_22 = arith.constant 0 : i32
    %41 = arith.cmpi ne, %40, %c0_i32_22 : i32
    scf.if %41 {
      %c0_23 = arith.constant 0 : index
      %c0_24 = arith.constant 0 : index
      %42 = vector.load %arg5[%c0_23, %c0_24] : memref<8x1xf32, #tpu.memory_space<vmem>>, vector<8x1xf32>
      %c0_25 = arith.constant 0 : index
      %c0_26 = arith.constant 0 : index
      %43 = vector.load %arg6[%c0_25, %c0_26] : memref<8x1xf32, #tpu.memory_space<vmem>>, vector<8x1xf32>
      %44 = math.log %43 : vector<8x1xf32>
      %45 = arith.addf %42, %44 : vector<8x1xf32>
      %c0_27 = arith.constant 0 : index
      %c0_28 = arith.constant 0 : index
      %46 = vector.load %arg7[%c0_27, %c0_28] : memref<8x1xf32, #tpu.memory_space<vmem>>, vector<8x1xf32>
      %47 = arith.subf %45, %46 : vector<8x1xf32>
      %c0_29 = arith.constant 0 : index
      %c0_30 = arith.constant 0 : index
      %48 = vector.load %arg4[%c0_29, %c0_30] : memref<8x1xf32, #tpu.memory_space<vmem>>, vector<8x1xf32>
      tpu.vector_store %arg4[%c0_29, %c0_30], %47 {strides = array<i32>} : memref<8x1xf32, #tpu.memory_space<vmem>>, vector<8x1xf32>,
    } else {
    }
    return
  }
  func.func @transform_0(%arg0: i32, %arg1: i32) -> (i32, i32) {
    %c0_i32 = arith.constant 0 : i32
    return %arg0, %arg1 : i32, i32
  }
  func.func @transform_1(%arg0: i32, %arg1: i32) -> (i32, i32) {
    %c0_i32 = arith.constant 0 : i32
    %c0_i32_0 = arith.constant 0 : i32
    return %arg0, %c0_i32 : i32, i32
  }
  func.func @transform_2(%arg0: i32, %arg1: i32) -> (i32, i32) {
    %c0_i32 = arith.constant 0 : i32
    %c0_i32_0 = arith.constant 0 : i32
    return %arg0, %c0_i32 : i32, i32
  }
}

</mosaic_0001>

<llo_original>
// kernel: tpu_custom_call.1
$region0: #{tpu_custom_call.1}
  #allocation0 [shape = 'u32[]', space=smem, size = 0x4, offset = 0x4, fixed_abs, tag = 'smem constant byte address 0x4 - core index']
  #allocation1 [shape = 'u32[144,128]{1,0:T(1,128)}', space=vmem, size = 0x12000, scoped, tag = 'internal scratch']
  #allocation2 [shape = 'f32[8,1]{1,0:T(8,128)}', space=vmem, size = 0x1000, scoped, tag = 'scratch operand']
  #allocation3 [shape = 'f32[8,1]{1,0:T(8,128)}', space=vmem, size = 0x1000, scoped, tag = 'scratch operand']
  #allocation4 [shape = 'f32[8,1]{1,0:T(8,128)}', space=vmem, size = 0x1000, scoped, tag = 'scratch operand']
  %s0 = inlined_call_operand.vmem [shape: f32[8,32], index: 0, kind: input, shape index: {}]
  %s1 = inlined_call_operand.vmem [shape: s32[8,1], index: 1, kind: input, shape index: {}]
  %s2 = inlined_call_operand.vmem [shape: f32[8,1], index: 2, kind: output, shape index: {}]
  %s3 = sld [smem:[#allocation0]]
  $region26: #{tpu_custom_call.1} parent=0
    _
  %s5 = ssub.s32 1, %s3
  %s6 = scalar_select 0, %s5, %s3
  // Predicated region
  $region2: #{tpu_custom_call.1} parent=0 // pred_check
    _
  $region3: #{tpu_custom_call.1} parent=0 // pred_check_branch
    %8 = sbr.rel (0) target = $region5
  $region4: #{tpu_custom_call.1} parent=0 // pred_region
    _
  $region5: #{tpu_custom_call.1} parent=0 // pred_fallthru
    _
  // Predicated region
  $region6: #{tpu_custom_call.1} parent=0 // pred_check
    _
  $region7: #{tpu_custom_call.1} parent=0 // pred_check_branch
    %10 = sbr.rel (0) target = $region9
  $region8: #{tpu_custom_call.1} parent=0 // pred_region
    _
  $region9: #{tpu_custom_call.1} parent=0 // pred_fallthru
    _
  %p11 = scmp.eq.s32.totalorder 0, 0
  // Predicated region
  $region10: #{tpu_custom_call.1} parent=0 // pred_check
    %p12 = pneg %p11
  $region11: #{tpu_custom_call.1} parent=0 // pred_check_branch
    %14 = sbr.rel (%p12) target = $region13
  $region12: #{tpu_custom_call.1} parent=0 // pred_region
    %vm15 = vcmask 7168
    %16 = vst.msk [vmem:[#allocation2] sm:$0xff] %vm15, -1e+30
    %17 = vst.msk [vmem:[#allocation3] sm:$0xff] %vm15, 0.0
    %18 = vst.msk [vmem:[#allocation4] sm:$0xff] %vm15, 0.0
  $region13: #{tpu_custom_call.1} parent=0 // pred_fallthru
    _
  %v19 = vld [vmem:[%s0] sm:$0xff]
  %v20 = vmul.f32 %v19, 30.0
  %v21 = vld [vmem:[%s1] sm:$0xff]
  %s22 = smul.u32 0, 32
  %v23 = vstv %s22
  %v24 = vsub.s32 %v21, %v23
  %v25 = vlaneseq
  %v26 = vand.u32 %v25, 127
  %27 = vset.pattern.permute.xlu0 0
  %28 = vperm.xlu0 %27, %v24
  %v29 = vpop.permute.xlu0 %28
  %vm30 = vcmp.eq.s32.totalorder %v26, %v29
  %v31 = vsub.f32 %v20, 10.5
  %v32 = vsel %vm30, %v31, %v20
  %v33 = vld [vmem:[#allocation2] sm:$0xff]
  %vm34 = vcmask 261120
  %v35 = vsel %vm34, %v32, -inf
  %36 = vmax.xlane.f32.xlu0 %v35
  %v37 = vpop.xlane.xlu0 %36
  %v38 = vmax.f32 %v33, %v37
  %v39 = vsub.f32 %v33, %v38
  %v40 = vmul.f32 %v39, 1.442695
  %v41 = vpow.pop %v40
  %v42 = vld [vmem:[#allocation3] sm:$0xff]
  %v43 = vmul.f32 %v42, %v41
  %45 = vset.pattern.permute.xlu0 0
  %46 = vperm.xlu0 %45, %v38
  %v47 = vpop.permute.xlu0 %46
  %v49 = vsub.f32 %v32, %v47
  %v50 = vmul.f32 %v49, 1.442695
  %v51 = vpow.pop %v50
  %v52 = vsel %vm34, %v51, 0.0
  %53 = vadd.xlane.f32.xlu0 %v52
  %v54 = vpop.xlane.xlu0 %53
  %v55 = vadd.f32 %v43, %v54
  %vm56 = vcmask 7168
  %57 = vst.msk [vmem:[#allocation3] sm:$0xff] %vm56, %v55
  %v58 = vld [vmem:[#allocation4] sm:$0xff]
  %v59 = vsel %vm30, %v31, 0.0
  %v60 = vsel %vm34, %v59, 0.0
  %61 = vadd.xlane.f32.xlu0 %v60
  %v62 = vpop.xlane.xlu0 %61
  %v63 = vadd.f32 %v58, %v62
  %64 = vst.msk [vmem:[#allocation4] sm:$0xff] %vm56, %v63
  %65 = vst.msk [vmem:[#allocation2] sm:$0xff] %vm56, %v38
  // Predicated region
  $region14: #{tpu_custom_call.1} parent=0 // pred_check
    %p66 = pneg %p11
  $region15: #{tpu_custom_call.1} parent=0 // pred_check_branch
    %68 = sbr.rel (%p66) target = $region17
  $region16: #{tpu_custom_call.1} parent=0 // pred_region
    %v69 = vld [vmem:[#allocation2] sm:$0xff]
    %v70 = vld [vmem:[#allocation3] sm:$0xff]
    %v71 = vlog2.pop %v70
    %v72 = vmul.f32 %v71, 0.6931472
    %v73 = vadd.f32 %v69, %v72
    %v74 = vld [vmem:[#allocation4] sm:$0xff]
    %v75 = vsub.f32 %v73, %v74
    %76 = vst.msk [vmem:[%s2] sm:$0xff] %vm56, %v75
  $region17: #{tpu_custom_call.1} parent=0 // pred_fallthru
    _
  // Predicated region
  $region18: #{tpu_custom_call.1} parent=0 // pred_check
    _
  $region19: #{tpu_custom_call.1} parent=0 // pred_check_branch
    %78 = sbr.rel (0) target = $region21
  $region20: #{tpu_custom_call.1} parent=0 // pred_region
    _
  $region21: #{tpu_custom_call.1} parent=0 // pred_fallthru
    _
  // Predicated region
  $region22: #{tpu_custom_call.1} parent=0 // pred_check
    _
  $region23: #{tpu_custom_call.1} parent=0 // pred_check_branch
    %80 = sbr.rel (0) target = $region25
  $region24: #{tpu_custom_call.1} parent=0 // pred_region
    _
  $region25: #{tpu_custom_call.1} parent=0 // pred_fallthru
    _

</llo_original>
